<compile_context>
chip_gen: v6e
topology: v6e:2x2x1
jax: 0.10.0
libtpu: 0.0.40
codegen_flags: <defaults>
</compile_context>

<pallas_src>
import jax
import jax.numpy as jnp
from jax import lax
from jax.experimental import pallas as pl
from jax.experimental.pallas import tpu as pltpu

_LANE = 128
_SUBLANE = 8


def _round_up(x, m):
    return ((x + m - 1) // m) * m


def _mlp_kernel(x_ref, w1_ref, b1_ref, w2_ref, b2_ref, o_ref):
    # All operands f32; HIGHEST-precision MXU matmuls (MXU is nowhere near the
    # binding resource here - the x HBM stream is), so no quantization drift
    # vs. the f32 PyTorch reference.
    x = x_ref[...]
    h = jnp.dot(x, w1_ref[...], preferred_element_type=jnp.float32,
                precision=lax.Precision.HIGHEST)
    h = jnp.maximum(h + b1_ref[...], 0.0)                     # ReLU
    y = jnp.dot(h, w2_ref[...], preferred_element_type=jnp.float32,
                precision=lax.Precision.HIGHEST)
    y = jnp.maximum(y + b2_ref[...], 0.0)                     # ReLU
    o_ref[...] = y.astype(o_ref.dtype)


def net_forward(x, w1, b1, w2, b2, *, target_tile_rows=8192):
    """x: (N, ...) flattened to (N, attr_count); returns (N, 2) float32."""
    n = x.shape[0]
    x2d = x.reshape(n, -1).astype(jnp.float32)      # like x.view(x.size(0), -1)
    attr = x2d.shape[1]
    hidden, out_dim = 10, 2
    assert w1.shape == (attr, hidden) and w2.shape == (hidden, out_dim)

    # ---- Row packing for lane density -------------------------------------
    # Pack `pack` logical rows per physical row (free, contiguous reshape) and
    # use block-diagonal packed weights; output stays row-major identical.
    if attr <= _LANE // 2 and _LANE % attr == 0:
        pack = _LANE // attr
        while pack > 1 and n % pack:
            pack //= 2
    else:
        pack = 1

    if pack > 1:
        xp = x2d.reshape(n // pack, pack * attr)     # contiguous -> free reshape
        eye = jnp.eye(pack, dtype=jnp.float32)
        w1p = jnp.kron(eye, w1.astype(jnp.float32))  # (pack*attr, pack*10)
        w2p = jnp.kron(eye, w2.astype(jnp.float32))  # (pack*10,  pack*2)
        b1p = jnp.tile(b1.reshape(-1).astype(jnp.float32), pack)[None, :]
        b2p = jnp.tile(b2.reshape(-1).astype(jnp.float32), pack)[None, :]
    else:
        xp = x2d
        w1p = w1.astype(jnp.float32)
        w2p = w2.astype(jnp.float32)
        b1p = b1.reshape(1, hidden).astype(jnp.float32)
        b2p = b2.reshape(1, out_dim).astype(jnp.float32)

    n_rows, xw = xp.shape
    hw = pack * hidden
    ow = pack * out_dim

    # ---- Tile sizing with lane-padded VMEM accounting ----------------------
    # Double-buffered x block + f32 hidden intermediate + double-buffered
    # output block, each padded to 128 lanes, all f32.
    xw_pad = _round_up(xw, _LANE)
    hw_pad = _round_up(hw, _LANE)
    ow_pad = _round_up(ow, _LANE)
    bytes_per_row = 4 * (2 * xw_pad + hw_pad + 2 * ow_pad)
    block_budget = 16 * 1024 * 1024                  # headroom under 32 MiB limit
    max_rows = max(_SUBLANE,
                   (block_budget // bytes_per_row) // _SUBLANE * _SUBLANE)

    tn = min(target_tile_rows, max_rows)
    tn = min(tn, _round_up(n_rows, _SUBLANE))                       # <= problem
    tn = min(tn, _round_up(max(1, (n_rows + 1) // 2), _SUBLANE))    # >=2 tiles
    tn = max(_SUBLANE, (tn // _SUBLANE) * _SUBLANE)

    num_tiles = pl.cdiv(n_rows, tn)                  # last block may be partial

    out = pl.pallas_call(
        _mlp_kernel,
        out_shape=jax.ShapeDtypeStruct((n_rows, ow), jnp.float32),
        grid=(num_tiles,),
        in_specs=[
            # x: tiled along (packed) batch rows, full width on the lane axis.
            pl.BlockSpec((tn, xw), lambda i: (i, 0)),
            # Weights/biases: constant block index -> resident in VMEM.
            pl.BlockSpec((xw, hw), lambda i: (0, 0)),
            pl.BlockSpec((1, hw), lambda i: (0, 0)),
            pl.BlockSpec((hw, ow), lambda i: (0, 0)),
            pl.BlockSpec((1, ow), lambda i: (0, 0)),
        ],
        out_specs=pl.BlockSpec((tn, ow), lambda i: (i, 0)),
        compiler_params=pltpu.CompilerParams(
            dimension_semantics=("parallel",),
            vmem_limit_bytes=32 * 1024 * 1024,
        ),
    )(xp, w1p, b1p, w2p, b2p)

    # (n_rows, pack*2) is row-major identical to (n, 2): free reshape.
    return out.reshape(n, out_dim)


def init_params(key, attr_count):
    """Deterministic synthetic init (PyTorch-style uniform bounds)."""
    k1, k2, k3, k4 = jax.random.split(key, 4)
    bound1 = 1.0 / jnp.sqrt(attr_count)
    bound2 = 1.0 / jnp.sqrt(10.0)
    w1 = jax.random.uniform(k1, (attr_count, 10), jnp.float32, -bound1, bound1)
    b1 = jax.random.uniform(k2, (10,), jnp.float32, -bound1, bound1)
    w2 = jax.random.uniform(k3, (10, 2), jnp.float32, -bound2, bound2)
    b2 = jax.random.uniform(k4, (2,), jnp.float32, -bound2, bound2)
    return w1, b1, w2, b2


def _reference(x, w1, b1, w2, b2):
    # Pure-JAX f32 reference (HIGHEST precision to match the kernel's dots).
    x2d = x.reshape(x.shape[0], -1).astype(jnp.float32)
    h = jnp.maximum(
        jnp.dot(x2d, w1, precision=lax.Precision.HIGHEST) + b1.reshape(1, -1), 0.0)
    return jnp.maximum(
        jnp.dot(h, w2, precision=lax.Precision.HIGHEST) + b2.reshape(1, -1), 0.0)


if __name__ == "__main__":
    key = jax.random.PRNGKey(0)
    kx, kx2, kx3, kp = jax.random.split(key, 4)

    attr_count = 32
    w1, b1, w2, b2 = init_params(kp, attr_count)

    # Case 1: tiny batch -> single (partial) tile, packed path (4 rows/phys row).
    x = jax.random.normal(kx, (8, attr_count), jnp.float32)
    out = net_forward(x, w1, b1, w2, b2)
    jax.block_until_ready(out)
    ref = _reference(x, w1, b1, w2, b2)
    assert out.shape == (8, 2)
    assert jnp.allclose(out, ref, atol=1e-4, rtol=1e-4)

    # Case 2: multi-tile grid with a partial last block (packed path).
    x2 = jax.random.normal(kx2, (1000, attr_count), jnp.float32)
    out2 = net_forward(x2, w1, b1, w2, b2)
    jax.block_until_ready(out2)
    ref2 = _reference(x2, w1, b1, w2, b2)
    assert out2.shape == (1000, 2)
    assert jnp.allclose(out2, ref2, atol=1e-4, rtol=1e-4)

    # Case 3: batch not divisible by the packing factor -> unpacked fallback,
    # multi-tile grid with a partial last block.
    x3 = jax.random.normal(kx3, (1003, attr_count), jnp.float32)
    out3 = net_forward(x3, w1, b1, w2, b2)
    jax.block_until_ready(out3)
    ref3 = _reference(x3, w1, b1, w2, b2)
    assert out3.shape == (1003, 2)
    assert jnp.allclose(out3, ref3, atol=1e-4, rtol=1e-4)

    print("KERNEL_OK")
</pallas_src>

<mosaic_0001>
module attributes {stable_mosaic.version = 11 : i64} {
  func.func @_mlp_kernel(%arg0: i32, %arg1: memref<8x128xf32, #tpu.memory_space<vmem>>, %arg2: memref<128x40xf32, #tpu.memory_space<vmem>>, %arg3: memref<1x40xf32, #tpu.memory_space<vmem>>, %arg4: memref<40x8xf32, #tpu.memory_space<vmem>>, %arg5: memref<1x8xf32, #tpu.memory_space<vmem>>, %arg6: memref<8x8xf32, #tpu.memory_space<vmem>>) attributes {dimension_semantics = [#tpu.dimension_semantics<parallel>], iteration_bounds = array<i64: 1>, scalar_prefetch = 0 : i64, scratch_operands = 0 : i64, tpu.core_type = #tpu.core_type<tc>, window_params = [{transform_indices = @transform_0, window_bounds = array<i64: 8, 128>}, {pipeline_mode = #tpu.pipeline_mode<synchronous>, transform_indices = @transform_1, window_bounds = array<i64: 128, 40>}, {pipeline_mode = #tpu.pipeline_mode<synchronous>, transform_indices = @transform_2, window_bounds = array<i64: 1, 40>}, {pipeline_mode = #tpu.pipeline_mode<synchronous>, transform_indices = @transform_3, window_bounds = array<i64: 40, 8>}, {pipeline_mode = #tpu.pipeline_mode<synchronous>, transform_indices = @transform_4, window_bounds = array<i64: 1, 8>}, {transform_indices = @transform_5, window_bounds = array<i64: 8, 8>}]} {
    %c0 = arith.constant 0 : index
    %c0_0 = arith.constant 0 : index
    %0 = vector.load %arg1[%c0, %c0_0] : memref<8x128xf32, #tpu.memory_space<vmem>>, vector<8x128xf32>
    %c0_1 = arith.constant 0 : index
    %c0_2 = arith.constant 0 : index
    %1 = vector.load %arg2[%c0_1, %c0_2] : memref<128x40xf32, #tpu.memory_space<vmem>>, vector<128x40xf32>
    %cst = arith.constant dense<0.000000e+00> : vector<8x40xf32>
    %2 = tpu.matmul %0, %1, %cst {dimension_numbers = #tpu.dot_dimension_numbers<[1], [0], [0], [1], [0, 0, 1, 1], [], []>, precision = #tpu.contract_precision<fp32>} : vector<8x128xf32>, vector<128x40xf32>, vector<8x40xf32> -> vector<8x40xf32>
    %c0_3 = arith.constant 0 : index
    %c0_4 = arith.constant 0 : index
    %3 = vector.load %arg3[%c0_3, %c0_4] : memref<1x40xf32, #tpu.memory_space<vmem>>, vector<1x40xf32>
    %4 = vector.broadcast %3 : vector<1x40xf32> to vector<8x40xf32>
    %5 = arith.addf %2, %4 : vector<8x40xf32>
    %cst_5 = arith.constant 0.000000e+00 : f32
    %6 = vector.broadcast %cst_5 : f32 to vector<8x40xf32>
    %7 = arith.maximumf %5, %6 : vector<8x40xf32>
    %c0_6 = arith.constant 0 : index
    %c0_7 = arith.constant 0 : index
    %8 = vector.load %arg4[%c0_6, %c0_7] : memref<40x8xf32, #tpu.memory_space<vmem>>, vector<40x8xf32>
    %cst_8 = arith.constant dense<0.000000e+00> : vector<8x8xf32>
    %9 = tpu.matmul %7, %8, %cst_8 {dimension_numbers = #tpu.dot_dimension_numbers<[1], [0], [0], [1], [0, 0, 1, 1], [], []>, precision = #tpu.contract_precision<fp32>} : vector<8x40xf32>, vector<40x8xf32>, vector<8x8xf32> -> vector<8x8xf32>
    %c0_9 = arith.constant 0 : index
    %c0_10 = arith.constant 0 : index
    %10 = vector.load %arg5[%c0_9, %c0_10] : memref<1x8xf32, #tpu.memory_space<vmem>>, vector<1x8xf32>
    %11 = vector.broadcast %10 : vector<1x8xf32> to vector<8x8xf32>
    %12 = arith.addf %9, %11 : vector<8x8xf32>
    %cst_11 = arith.constant 0.000000e+00 : f32
    %13 = vector.broadcast %cst_11 : f32 to vector<8x8xf32>
    %14 = arith.maximumf %12, %13 : vector<8x8xf32>
    %c0_12 = arith.constant 0 : index
    %c0_13 = arith.constant 0 : index
    %15 = vector.load %arg6[%c0_12, %c0_13] : memref<8x8xf32, #tpu.memory_space<vmem>>, vector<8x8xf32>
    tpu.vector_store %arg6[%c0_12, %c0_13], %14 {strides = array<i32>} : memref<8x8xf32, #tpu.memory_space<vmem>>, vector<8x8xf32>,
    return
  }
  func.func @transform_0(%arg0: i32) -> (i32, i32) {
    %c0_i32 = arith.constant 0 : i32
    %c0_i32_0 = arith.constant 0 : i32
    return %arg0, %c0_i32 : i32, i32
  }
  func.func @transform_1(%arg0: i32) -> (i32, i32) {
    %c0_i32 = arith.constant 0 : i32
    %c0_i32_0 = arith.constant 0 : i32
    %c0_i32_1 = arith.constant 0 : i32
    return %c0_i32, %c0_i32_0 : i32, i32
  }
  func.func @transform_2(%arg0: i32) -> (i32, i32) {
    %c0_i32 = arith.constant 0 : i32
    %c0_i32_0 = arith.constant 0 : i32
    %c0_i32_1 = arith.constant 0 : i32
    return %c0_i32, %c0_i32_0 : i32, i32
  }
  func.func @transform_3(%arg0: i32) -> (i32, i32) {
    %c0_i32 = arith.constant 0 : i32
    %c0_i32_0 = arith.constant 0 : i32
    %c0_i32_1 = arith.constant 0 : i32
    return %c0_i32, %c0_i32_0 : i32, i32
  }
  func.func @transform_4(%arg0: i32) -> (i32, i32) {
    %c0_i32 = arith.constant 0 : i32
    %c0_i32_0 = arith.constant 0 : i32
    %c0_i32_1 = arith.constant 0 : i32
    return %c0_i32, %c0_i32_0 : i32, i32
  }
  func.func @transform_5(%arg0: i32) -> (i32, i32) {
    %c0_i32 = arith.constant 0 : i32
    %c0_i32_0 = arith.constant 0 : i32
    return %arg0, %c0_i32 : i32, i32
  }
}

</mosaic_0001>

<llo_original>
// kernel: tpu_custom_call.1
$region0: #{tpu_custom_call.1}
  #allocation0 [shape = 'u32[]', space=smem, size = 0x4, offset = 0x4, fixed_abs, tag = 'smem constant byte address 0x4 - core index']
  #allocation1 [shape = 'u32[144,128]{1,0:T(1,128)}', space=vmem, size = 0x12000, scoped, tag = 'internal scratch']
  %s0 = inlined_call_operand.vmem [shape: f32[2,128], index: 0, kind: input, shape index: {}]
  %s1 = inlined_call_operand.vmem [shape: f32[128,40], index: 1, kind: input, shape index: {}]
  %s2 = inlined_call_operand.vmem [shape: f32[1,40], index: 2, kind: input, shape index: {}]
  %s3 = inlined_call_operand.vmem [shape: f32[40,8], index: 3, kind: input, shape index: {}]
  %s4 = inlined_call_operand.vmem [shape: f32[1,8], index: 4, kind: input, shape index: {}]
  %s5 = inlined_call_operand.hbm [shape: f32[2,8], index: 5, kind: output, shape index: {}]
  %s6 = sld [smem:[#allocation0]]
  $region30: #{tpu_custom_call.1} parent=0
    _
  %s8 = ssub.s32 1, %s6
  %s9 = scalar_select 0, %s8, %s6
  $region1: #{tpu_custom_call.1} parent=0
    #allocation2 [shape = 'u8[4096]{0}', space=vmem, size = 0x1000, scoped, tag = 'output window, operand 0, single buffered']
    #allocation3 [shape = 's32[1]{0}', space=sflag, size = 0x4, scoped, tag = 'scoped memory for tpu_custom_call.1']
    %10 = vsyncpa [#allocation3], 0
    // Predicated region
    $region2: #{tpu_custom_call.1} parent=1 // pred_check
      _
    $region3: #{tpu_custom_call.1} parent=1 // pred_check_branch
      %12 = sbr.rel (0) target = $region5
    $region4: #{tpu_custom_call.1} parent=1 // pred_region
      _
    $region5: #{tpu_custom_call.1} parent=1 // pred_fallthru
      _
    // Predicated region
    $region6: #{tpu_custom_call.1} parent=1 // pred_check
      _
    $region7: #{tpu_custom_call.1} parent=1 // pred_check_branch
      %14 = sbr.rel (0) target = $region9
    $region8: #{tpu_custom_call.1} parent=1 // pred_region
      _
    $region9: #{tpu_custom_call.1} parent=1 // pred_fallthru
      _
    // Predicated region
    $region10: #{tpu_custom_call.1} parent=1 // pred_check
      _
    $region11: #{tpu_custom_call.1} parent=1 // pred_check_branch
      %16 = sbr.rel (0) target = $region13
    $region12: #{tpu_custom_call.1} parent=1 // pred_region
      _
    $region13: #{tpu_custom_call.1} parent=1 // pred_fallthru
      _
    // Predicated region
    $region14: #{tpu_custom_call.1} parent=1 // pred_check
      _
    $region15: #{tpu_custom_call.1} parent=1 // pred_check_branch
      %18 = sbr.rel (0) target = $region17
    $region16: #{tpu_custom_call.1} parent=1 // pred_region
      _
    $region17: #{tpu_custom_call.1} parent=1 // pred_fallthru
      _
    // Predicated region
    $region18: #{tpu_custom_call.1} parent=1 // pred_check
      _
    $region19: #{tpu_custom_call.1} parent=1 // pred_check_branch
      %20 = sbr.rel (0) target = $region21
    $region20: #{tpu_custom_call.1} parent=1 // pred_region
      _
    $region21: #{tpu_custom_call.1} parent=1 // pred_fallthru
      _
    %v21 = vld [vmem:[%s0] sm:$0xff]
    %v22 = vld [vmem:[%s1] sm:$0xff]
    %v23 = vld [vmem:[%s1 + $0x8] sm:$0xff]
    %v24 = vld [vmem:[%s1 + $0x10] sm:$0xff]
    %v25 = vld [vmem:[%s1 + $0x18] sm:$0xff]
    %v26 = vld [vmem:[%s1 + $0x20] sm:$0xff]
    %v27 = vld [vmem:[%s1 + $0x28] sm:$0xff]
    %v28 = vld [vmem:[%s1 + $0x30] sm:$0xff]
    %v29 = vld [vmem:[%s1 + $0x38] sm:$0xff]
    %v30 = vld [vmem:[%s1 + $0x40] sm:$0xff]
    %v31 = vld [vmem:[%s1 + $0x48] sm:$0xff]
    %v32 = vld [vmem:[%s1 + $0x50] sm:$0xff]
    %v33 = vld [vmem:[%s1 + $0x58] sm:$0xff]
    %v34 = vld [vmem:[%s1 + $0x60] sm:$0xff]
    %v35 = vld [vmem:[%s1 + $0x68] sm:$0xff]
    %v36 = vld [vmem:[%s1 + $0x70] sm:$0xff]
    %v37 = vld [vmem:[%s1 + $0x78] sm:$0xff]
    %v38 = vld [vmem:[%s2] sm:$0x1]
    %v40 = vlaneseq
    %v41 = vshrl.u32 %v40, 7
    %v42 = vsub.s32 0, %v41
    %v43 = vrot.slane %v38, %v42
    %45 = vmatprep.subr.mxu0 0.0
    %v46 = vand.u32 %v37, 4294901760
    %47 = vmatpush1.msra.mxu0 %v46
    %48 = vmatprep.subr.mxu0 0.0
    %v49 = vand.u32 %v36, 4294901760
    %50 = vmatpush1.msra.mxu0 %v49
    %51 = vmatprep.subr.mxu0 0.0
    %v52 = vand.u32 %v35, 4294901760
    %53 = vmatpush1.msra.mxu0 %v52
    %54 = vmatprep.subr.mxu0 0.0
    %v55 = vand.u32 %v34, 4294901760
    %56 = vmatpush1.msra.mxu0 %v55
    %57 = vmatprep.subr.mxu0 0.0
    %v58 = vand.u32 %v33, 4294901760
    %59 = vmatpush1.msra.mxu0 %v58
    %60 = vmatprep.subr.mxu0 0.0
    %v61 = vand.u32 %v32, 4294901760
    %62 = vmatpush1.msra.mxu0 %v61
    %63 = vmatprep.subr.mxu0 0.0
    %v64 = vand.u32 %v31, 4294901760
    %65 = vmatpush1.msra.mxu0 %v64
    %66 = vmatprep.subr.mxu0 0.0
    %v67 = vand.u32 %v30, 4294901760
    %68 = vmatpush1.msra.mxu0 %v67
    %69 = vmatprep.subr.mxu0 0.0
    %v70 = vand.u32 %v29, 4294901760
    %71 = vmatpush1.msra.mxu0 %v70
    %72 = vmatprep.subr.mxu0 0.0
    %v73 = vand.u32 %v28, 4294901760
    %74 = vmatpush1.msra.mxu0 %v73
    %75 = vmatprep.subr.mxu0 0.0
    %v76 = vand.u32 %v27, 4294901760
    %77 = vmatpush1.msra.mxu0 %v76
    %78 = vmatprep.subr.mxu0 0.0
    %v79 = vand.u32 %v26, 4294901760
    %80 = vmatpush1.msra.mxu0 %v79
    %81 = vmatprep.subr.mxu0 0.0
    %v82 = vand.u32 %v25, 4294901760
    %83 = vmatpush1.msra.mxu0 %v82
    %84 = vmatprep.subr.mxu0 0.0
    %v85 = vand.u32 %v24, 4294901760
    %86 = vmatpush1.msra.mxu0 %v85
    %87 = vmatprep.subr.mxu0 0.0
    %v88 = vand.u32 %v23, 4294901760
    %89 = vmatpush1.msra.mxu0 %v88
    %90 = vmatprep.subr.mxu0 0.0
    %v91 = vand.u32 %v22, 4294901760
    %92 = vmatpush1.msra.mxu0 %v91
    %93 = vmatprep.subr.mxu0 0.0
    %94 = vmatpush2.msra.mxu0 0.0
    %95 = vmatprep.subr.mxu0 0.0
    %96 = vmatpush2.msra.mxu0 0.0
    %97 = vmatprep.subr.mxu0 0.0
    %98 = vmatpush2.msra.mxu0 0.0
    %99 = vmatprep.subr.mxu0 0.0
    %100 = vmatpush2.msra.mxu0 0.0
    %101 = vmatprep.subr.mxu0 0.0
    %102 = vmatpush2.msra.mxu0 0.0
    %103 = vmatprep.subr.mxu0 0.0
    %104 = vmatpush2.msra.mxu0 0.0
    %105 = vmatprep.subr.mxu0 0.0
    %106 = vmatpush2.msra.mxu0 0.0
    %107 = vmatprep.subr.mxu0 0.0
    %108 = vmatpush2.msra.mxu0 0.0
    %109 = vmatprep.subr.mxu0 0.0
    %110 = vmatpush2.msra.mxu0 0.0
    %111 = vmatprep.subr.mxu0 0.0
    %112 = vmatpush2.msra.mxu0 0.0
    %113 = vmatprep.subr.mxu0 0.0
    %114 = vmatpush2.msra.mxu0 0.0
    %115 = vmatprep.subr.mxu0 0.0
    %116 = vmatpush2.msra.mxu0 0.0
    %117 = vmatprep.subr.mxu0 0.0
    %118 = vmatpush2.msra.mxu0 0.0
    %119 = vmatprep.subr.mxu0 0.0
    %120 = vmatpush2.msra.mxu0 0.0
    %121 = vmatprep.subr.mxu0 0.0
    %122 = vmatpush2.msra.mxu0 0.0
    %123 = vmatprep.subr.mxu0 0.0
    %124 = vmatpush2.msra.mxu0 0.0
    %125 = vmatprep.mubr.f32.mxu0 0.0
    %v126 = vand.u32 %v21, 4294901760
    %v127 = vsub.f32 %v21, %v126
    %v128 = vand.u32 %v127, 4294901760
    %v129 = vsub.f32 %v127, %v128
    %v130 = vand.u32 %v129, 4294901760
    %131 = vmatmul.mubr.f32.gmra.mxu0 %v130
    %v132 = vpop.f32.mrf.mxu0
    %v133 = vadd.f32 %v43, %v132
    %v134 = vpop.f32.mrf.mxu0
    %135 = vdwg.mxu0
    %136 = vmatprep.subr.mxu0 0.0
    %v137 = vand.u32 %v37, 4294901760
    %v138 = vsub.f32 %v37, %v137
    %v139 = vand.u32 %v138, 4294901760
    %v140 = vsub.f32 %v138, %v139
    %v141 = vand.u32 %v140, 4294901760
    %142 = vmatpush1.msra.mxu0 %v141
    %143 = vmatprep.subr.mxu0 0.0
    %v144 = vand.u32 %v36, 4294901760
    %v145 = vsub.f32 %v36, %v144
    %v146 = vand.u32 %v145, 4294901760
    %v147 = vsub.f32 %v145, %v146
    %v148 = vand.u32 %v147, 4294901760
    %149 = vmatpush1.msra.mxu0 %v148
    %150 = vmatprep.subr.mxu0 0.0
    %v151 = vand.u32 %v35, 4294901760
    %v152 = vsub.f32 %v35, %v151
    %v153 = vand.u32 %v152, 4294901760
    %v154 = vsub.f32 %v152, %v153
    %v155 = vand.u32 %v154, 4294901760
    %156 = vmatpush1.msra.mxu0 %v155
    %157 = vmatprep.subr.mxu0 0.0
    %v158 = vand.u32 %v34, 4294901760
    %v159 = vsub.f32 %v34, %v158
    %v160 = vand.u32 %v159, 4294901760
    %v161 = vsub.f32 %v159, %v160
    %v162 = vand.u32 %v161, 4294901760
    %163 = vmatpush1.msra.mxu0 %v162
    %164 = vmatprep.subr.mxu0 0.0
    %v165 = vand.u32 %v33, 4294901760
    %v166 = vsub.f32 %v33, %v165
    %v167 = vand.u32 %v166, 4294901760
    %v168 = vsub.f32 %v166, %v167
    %v169 = vand.u32 %v168, 4294901760
    %170 = vmatpush1.msra.mxu0 %v169
    %171 = vmatprep.subr.mxu0 0.0
    %v172 = vand.u32 %v32, 4294901760
    %v173 = vsub.f32 %v32, %v172
    %v174 = vand.u32 %v173, 4294901760
    %v175 = vsub.f32 %v173, %v174
    %v176 = vand.u32 %v175, 4294901760
    %177 = vmatpush1.msra.mxu0 %v176
    %178 = vmatprep.subr.mxu0 0.0
    %v179 = vand.u32 %v31, 4294901760
    %v180 = vsub.f32 %v31, %v179
    %v181 = vand.u32 %v180, 4294901760
    %v182 = vsub.f32 %v180, %v181
    %v183 = vand.u32 %v182, 4294901760
    %184 = vmatpush1.msra.mxu0 %v183
    %185 = vmatprep.subr.mxu0 0.0
    %v186 = vand.u32 %v30, 4294901760
    %v187 = vsub.f32 %v30, %v186
    %v188 = vand.u32 %v187, 4294901760
    %v189 = vsub.f32 %v187, %v188
    %v190 = vand.u32 %v189, 4294901760
    %191 = vmatpush1.msra.mxu0 %v190
    %192 = vmatprep.subr.mxu0 0.0
    %v193 = vand.u32 %v29, 4294901760
    %v194 = vsub.f32 %v29, %v193
    %v195 = vand.u32 %v194, 4294901760
    %v196 = vsub.f32 %v194, %v195
    %v197 = vand.u32 %v196, 4294901760
    %198 = vmatpush1.msra.mxu0 %v197
    %199 = vmatprep.subr.mxu0 0.0
    %v200 = vand.u32 %v28, 4294901760
    %v201 = vsub.f32 %v28, %v200
    %v202 = vand.u32 %v201, 4294901760
    %v203 = vsub.f32 %v201, %v202
    %v204 = vand.u32 %v203, 4294901760
    %205 = vmatpush1.msra.mxu0 %v204
    %206 = vmatprep.subr.mxu0 0.0
    %v207 = vand.u32 %v27, 4294901760
    %v208 = vsub.f32 %v27, %v207
    %v209 = vand.u32 %v208, 4294901760
    %v210 = vsub.f32 %v208, %v209
    %v211 = vand.u32 %v210, 4294901760
    %212 = vmatpush1.msra.mxu0 %v211
    %213 = vmatprep.subr.mxu0 0.0
    %v214 = vand.u32 %v26, 4294901760
    %v215 = vsub.f32 %v26, %v214
    %v216 = vand.u32 %v215, 4294901760
    %v217 = vsub.f32 %v215, %v216
    %v218 = vand.u32 %v217, 4294901760
    %219 = vmatpush1.msra.mxu0 %v218
    %220 = vmatprep.subr.mxu0 0.0
    %v221 = vand.u32 %v25, 4294901760
    %v222 = vsub.f32 %v25, %v221
    %v223 = vand.u32 %v222, 4294901760
    %v224 = vsub.f32 %v222, %v223
    %v225 = vand.u32 %v224, 4294901760
    %226 = vmatpush1.msra.mxu0 %v225
    %227 = vmatprep.subr.mxu0 0.0
    %v228 = vand.u32 %v24, 4294901760
    %v229 = vsub.f32 %v24, %v228
    %v230 = vand.u32 %v229, 4294901760
    %v231 = vsub.f32 %v229, %v230
    %v232 = vand.u32 %v231, 4294901760
    %233 = vmatpush1.msra.mxu0 %v232
    %234 = vmatprep.subr.mxu0 0.0
    %v235 = vand.u32 %v23, 4294901760
    %v236 = vsub.f32 %v23, %v235
    %v237 = vand.u32 %v236, 4294901760
    %v238 = vsub.f32 %v236, %v237
    %v239 = vand.u32 %v238, 4294901760
    %240 = vmatpush1.msra.mxu0 %v239
    %241 = vmatprep.subr.mxu0 0.0
    %v242 = vand.u32 %v22, 4294901760
    %v243 = vsub.f32 %v22, %v242
    %v244 = vand.u32 %v243, 4294901760
    %v245 = vsub.f32 %v243, %v244
    %v246 = vand.u32 %v245, 4294901760
    %247 = vmatpush1.msra.mxu0 %v246
    %248 = vmatprep.subr.mxu0 0.0
    %249 = vmatpush2.msra.mxu0 0.0
    %250 = vmatprep.subr.mxu0 0.0
    %251 = vmatpush2.msra.mxu0 0.0
    %252 = vmatprep.subr.mxu0 0.0
    %253 = vmatpush2.msra.mxu0 0.0
    %254 = vmatprep.subr.mxu0 0.0
    %255 = vmatpush2.msra.mxu0 0.0
    %256 = vmatprep.subr.mxu0 0.0
    %257 = vmatpush2.msra.mxu0 0.0
    %258 = vmatprep.subr.mxu0 0.0
    %259 = vmatpush2.msra.mxu0 0.0
    %260 = vmatprep.subr.mxu0 0.0
    %261 = vmatpush2.msra.mxu0 0.0
    %262 = vmatprep.subr.mxu0 0.0
    %263 = vmatpush2.msra.mxu0 0.0
    %264 = vmatprep.subr.mxu0 0.0
    %265 = vmatpush2.msra.mxu0 0.0
    %266 = vmatprep.subr.mxu0 0.0
    %267 = vmatpush2.msra.mxu0 0.0
    %268 = vmatprep.subr.mxu0 0.0
    %269 = vmatpush2.msra.mxu0 0.0
    %270 = vmatprep.subr.mxu0 0.0
    %271 = vmatpush2.msra.mxu0 0.0
    %272 = vmatprep.subr.mxu0 0.0
    %273 = vmatpush2.msra.mxu0 0.0
    %274 = vmatprep.subr.mxu0 0.0
    %275 = vmatpush2.msra.mxu0 0.0
    %276 = vmatprep.subr.mxu0 0.0
    %277 = vmatpush2.msra.mxu0 0.0
    %278 = vmatprep.subr.mxu0 0.0
    %279 = vmatpush2.msra.mxu0 0.0
    %280 = vmatprep.mubr.f32.mxu0 0.0
    %v281 = vand.u32 %v21, 4294901760
    %282 = vmatmul.mubr.f32.gmra.mxu0 %v281
    %v283 = vpop.f32.mrf.mxu0
    %v284 = vadd.f32 %v133, %v283
    %v285 = vpop.f32.mrf.mxu0
    %286 = vdwg.mxu0
    %287 = vmatprep.subr.mxu0 0.0
    %v288 = vand.u32 %v37, 4294901760
    %v289 = vsub.f32 %v37, %v288
    %290 = vmatpush1.msra.mxu0 %v289
    %291 = vmatprep.subr.mxu0 0.0
    %v292 = vand.u32 %v36, 4294901760
    %v293 = vsub.f32 %v36, %v292
    %294 = vmatpush1.msra.mxu0 %v293
    %295 = vmatprep.subr.mxu0 0.0
    %v296 = vand.u32 %v35, 4294901760
    %v297 = vsub.f32 %v35, %v296
    %298 = vmatpush1.msra.mxu0 %v297
    %299 = vmatprep.subr.mxu0 0.0
    %v300 = vand.u32 %v34, 4294901760
    %v301 = vsub.f32 %v34, %v300
    %302 = vmatpush1.msra.mxu0 %v301
    %303 = vmatprep.subr.mxu0 0.0
    %v304 = vand.u32 %v33, 4294901760
    %v305 = vsub.f32 %v33, %v304
    %306 = vmatpush1.msra.mxu0 %v305
    %307 = vmatprep.subr.mxu0 0.0
    %v308 = vand.u32 %v32, 4294901760
    %v309 = vsub.f32 %v32, %v308
    %310 = vmatpush1.msra.mxu0 %v309
    %311 = vmatprep.subr.mxu0 0.0
    %v312 = vand.u32 %v31, 4294901760
    %v313 = vsub.f32 %v31, %v312
    %314 = vmatpush1.msra.mxu0 %v313
    %315 = vmatprep.subr.mxu0 0.0
    %v316 = vand.u32 %v30, 4294901760
    %v317 = vsub.f32 %v30, %v316
    %318 = vmatpush1.msra.mxu0 %v317
    %319 = vmatprep.subr.mxu0 0.0
    %v320 = vand.u32 %v29, 4294901760
    %v321 = vsub.f32 %v29, %v320
    %322 = vmatpush1.msra.mxu0 %v321
    %323 = vmatprep.subr.mxu0 0.0
    %v324 = vand.u32 %v28, 4294901760
    %v325 = vsub.f32 %v28, %v324
    %326 = vmatpush1.msra.mxu0 %v325
    %327 = vmatprep.subr.mxu0 0.0
    %v328 = vand.u32 %v27, 4294901760
    %v329 = vsub.f32 %v27, %v328
    %330 = vmatpush1.msra.mxu0 %v329
    %331 = vmatprep.subr.mxu0 0.0
    %v332 = vand.u32 %v26, 4294901760
    %v333 = vsub.f32 %v26, %v332
    %334 = vmatpush1.msra.mxu0 %v333
    %335 = vmatprep.subr.mxu0 0.0
    %v336 = vand.u32 %v25, 4294901760
    %v337 = vsub.f32 %v25, %v336
    %338 = vmatpush1.msra.mxu0 %v337
    %339 = vmatprep.subr.mxu0 0.0
    %v340 = vand.u32 %v24, 4294901760
    %v341 = vsub.f32 %v24, %v340
    %342 = vmatpush1.msra.mxu0 %v341
    %343 = vmatprep.subr.mxu0 0.0
    %v344 = vand.u32 %v23, 4294901760
    %v345 = vsub.f32 %v23, %v344
    %346 = vmatpush1.msra.mxu0 %v345
    %347 = vmatprep.subr.mxu0 0.0
    %v348 = vand.u32 %v22, 4294901760
    %v349 = vsub.f32 %v22, %v348
    %350 = vmatpush1.msra.mxu0 %v349
    %351 = vmatprep.subr.mxu0 0.0
    %352 = vmatpush2.msra.mxu0 0.0
    %353 = vmatprep.subr.mxu0 0.0
    %354 = vmatpush2.msra.mxu0 0.0
    %355 = vmatprep.subr.mxu0 0.0
    %356 = vmatpush2.msra.mxu0 0.0
    %357 = vmatprep.subr.mxu0 0.0
    %358 = vmatpush2.msra.mxu0 0.0
    %359 = vmatprep.subr.mxu0 0.0
    %360 = vmatpush2.msra.mxu0 0.0
    %361 = vmatprep.subr.mxu0 0.0
    %362 = vmatpush2.msra.mxu0 0.0
    %363 = vmatprep.subr.mxu0 0.0
    %364 = vmatpush2.msra.mxu0 0.0
    %365 = vmatprep.subr.mxu0 0.0
    %366 = vmatpush2.msra.mxu0 0.0
    %367 = vmatprep.subr.mxu0 0.0
    %368 = vmatpush2.msra.mxu0 0.0
    %369 = vmatprep.subr.mxu0 0.0
    %370 = vmatpush2.msra.mxu0 0.0
    %371 = vmatprep.subr.mxu0 0.0
    %372 = vmatpush2.msra.mxu0 0.0
    %373 = vmatprep.subr.mxu0 0.0
    %374 = vmatpush2.msra.mxu0 0.0
    %375 = vmatprep.subr.mxu0 0.0
    %376 = vmatpush2.msra.mxu0 0.0
    %377 = vmatprep.subr.mxu0 0.0
    %378 = vmatpush2.msra.mxu0 0.0
    %379 = vmatprep.subr.mxu0 0.0
    %380 = vmatpush2.msra.mxu0 0.0
    %381 = vmatprep.subr.mxu0 0.0
    %382 = vmatpush2.msra.mxu0 0.0
    %383 = vmatprep.mubr.f32.mxu0 0.0
    %v384 = vand.u32 %v21, 4294901760
    %v385 = vsub.f32 %v21, %v384
    %386 = vmatmul.mubr.f32.gmra.mxu0 %v385
    %v387 = vpop.f32.mrf.mxu0
    %v388 = vadd.f32 %v284, %v387
    %v389 = vpop.f32.mrf.mxu0
    %390 = vdwg.mxu0
    %391 = vmatprep.subr.mxu0 0.0
    %v392 = vand.u32 %v37, 4294901760
    %393 = vmatpush1.msra.mxu0 %v392
    %394 = vmatprep.subr.mxu0 0.0
    %v395 = vand.u32 %v36, 4294901760
    %396 = vmatpush1.msra.mxu0 %v395
    %397 = vmatprep.subr.mxu0 0.0
    %v398 = vand.u32 %v35, 4294901760
    %399 = vmatpush1.msra.mxu0 %v398
    %400 = vmatprep.subr.mxu0 0.0
    %v401 = vand.u32 %v34, 4294901760
    %402 = vmatpush1.msra.mxu0 %v401
    %403 = vmatprep.subr.mxu0 0.0
    %v404 = vand.u32 %v33, 4294901760
    %405 = vmatpush1.msra.mxu0 %v404
    %406 = vmatprep.subr.mxu0 0.0
    %v407 = vand.u32 %v32, 4294901760
    %408 = vmatpush1.msra.mxu0 %v407
    %409 = vmatprep.subr.mxu0 0.0
    %v410 = vand.u32 %v31, 4294901760
    %411 = vmatpush1.msra.mxu0 %v410
    %412 = vmatprep.subr.mxu0 0.0
    %v413 = vand.u32 %v30, 4294901760
    %414 = vmatpush1.msra.mxu0 %v413
    %415 = vmatprep.subr.mxu0 0.0
    %v416 = vand.u32 %v29, 4294901760
    %417 = vmatpush1.msra.mxu0 %v416
    %418 = vmatprep.subr.mxu0 0.0
    %v419 = vand.u32 %v28, 4294901760
    %420 = vmatpush1.msra.mxu0 %v419
    %421 = vmatprep.subr.mxu0 0.0
    %v422 = vand.u32 %v27, 4294901760
    %423 = vmatpush1.msra.mxu0 %v422
    %424 = vmatprep.subr.mxu0 0.0
    %v425 = vand.u32 %v26, 4294901760
    %426 = vmatpush1.msra.mxu0 %v425
    %427 = vmatprep.subr.mxu0 0.0
    %v428 = vand.u32 %v25, 4294901760
    %429 = vmatpush1.msra.mxu0 %v428
    %430 = vmatprep.subr.mxu0 0.0
    %v431 = vand.u32 %v24, 4294901760
    %432 = vmatpush1.msra.mxu0 %v431
    %433 = vmatprep.subr.mxu0 0.0
    %v434 = vand.u32 %v23, 4294901760
    %435 = vmatpush1.msra.mxu0 %v434
    %436 = vmatprep.subr.mxu0 0.0
    %v437 = vand.u32 %v22, 4294901760
    %438 = vmatpush1.msra.mxu0 %v437
    %439 = vmatprep.subr.mxu0 0.0
    %440 = vmatpush2.msra.mxu0 0.0
    %441 = vmatprep.subr.mxu0 0.0
    %442 = vmatpush2.msra.mxu0 0.0
    %443 = vmatprep.subr.mxu0 0.0
    %444 = vmatpush2.msra.mxu0 0.0
    %445 = vmatprep.subr.mxu0 0.0
    %446 = vmatpush2.msra.mxu0 0.0
    %447 = vmatprep.subr.mxu0 0.0
    %448 = vmatpush2.msra.mxu0 0.0
    %449 = vmatprep.subr.mxu0 0.0
    %450 = vmatpush2.msra.mxu0 0.0
    %451 = vmatprep.subr.mxu0 0.0
    %452 = vmatpush2.msra.mxu0 0.0
    %453 = vmatprep.subr.mxu0 0.0
    %454 = vmatpush2.msra.mxu0 0.0
    %455 = vmatprep.subr.mxu0 0.0
    %456 = vmatpush2.msra.mxu0 0.0
    %457 = vmatprep.subr.mxu0 0.0
    %458 = vmatpush2.msra.mxu0 0.0
    %459 = vmatprep.subr.mxu0 0.0
    %460 = vmatpush2.msra.mxu0 0.0
    %461 = vmatprep.subr.mxu0 0.0
    %462 = vmatpush2.msra.mxu0 0.0
    %463 = vmatprep.subr.mxu0 0.0
    %464 = vmatpush2.msra.mxu0 0.0
    %465 = vmatprep.subr.mxu0 0.0
    %466 = vmatpush2.msra.mxu0 0.0
    %467 = vmatprep.subr.mxu0 0.0
    %468 = vmatpush2.msra.mxu0 0.0
    %469 = vmatprep.subr.mxu0 0.0
    %470 = vmatpush2.msra.mxu0 0.0
    %471 = vmatprep.mubr.f32.mxu0 0.0
    %v472 = vand.u32 %v21, 4294901760
    %v473 = vsub.f32 %v21, %v472
    %v474 = vand.u32 %v473, 4294901760
    %475 = vmatmul.mubr.f32.gmra.mxu0 %v474
    %v476 = vpop.f32.mrf.mxu0
    %v477 = vadd.f32 %v388, %v476
    %v478 = vpop.f32.mrf.mxu0
    %479 = vdwg.mxu0
    %480 = vmatprep.subr.mxu0 0.0
    %v481 = vand.u32 %v37, 4294901760
    %v482 = vsub.f32 %v37, %v481
    %v483 = vand.u32 %v482, 4294901760
    %484 = vmatpush1.msra.mxu0 %v483
    %485 = vmatprep.subr.mxu0 0.0
    %v486 = vand.u32 %v36, 4294901760
    %v487 = vsub.f32 %v36, %v486
    %v488 = vand.u32 %v487, 4294901760
    %489 = vmatpush1.msra.mxu0 %v488
    %490 = vmatprep.subr.mxu0 0.0
    %v491 = vand.u32 %v35, 4294901760
    %v492 = vsub.f32 %v35, %v491
    %v493 = vand.u32 %v492, 4294901760
    %494 = vmatpush1.msra.mxu0 %v493
    %495 = vmatprep.subr.mxu0 0.0
    %v496 = vand.u32 %v34, 4294901760
    %v497 = vsub.f32 %v34, %v496
    %v498 = vand.u32 %v497, 4294901760
    %499 = vmatpush1.msra.mxu0 %v498
    %500 = vmatprep.subr.mxu0 0.0
    %v501 = vand.u32 %v33, 4294901760
    %v502 = vsub.f32 %v33, %v501
    %v503 = vand.u32 %v502, 4294901760
    %504 = vmatpush1.msra.mxu0 %v503
    %505 = vmatprep.subr.mxu0 0.0
    %v506 = vand.u32 %v32, 4294901760
    %v507 = vsub.f32 %v32, %v506
    %v508 = vand.u32 %v507, 4294901760
    %509 = vmatpush1.msra.mxu0 %v508
    %510 = vmatprep.subr.mxu0 0.0
    %v511 = vand.u32 %v31, 4294901760
    %v512 = vsub.f32 %v31, %v511
    %v513 = vand.u32 %v512, 4294901760
    %514 = vmatpush1.msra.mxu0 %v513
    %515 = vmatprep.subr.mxu0 0.0
    %v516 = vand.u32 %v30, 4294901760
    %v517 = vsub.f32 %v30, %v516
    %v518 = vand.u32 %v517, 4294901760
    %519 = vmatpush1.msra.mxu0 %v518
    %520 = vmatprep.subr.mxu0 0.0
    %v521 = vand.u32 %v29, 4294901760
    %v522 = vsub.f32 %v29, %v521
    %v523 = vand.u32 %v522, 4294901760
    %524 = vmatpush1.msra.mxu0 %v523
    %525 = vmatprep.subr.mxu0 0.0
    %v526 = vand.u32 %v28, 4294901760
    %v527 = vsub.f32 %v28, %v526
    %v528 = vand.u32 %v527, 4294901760
    %529 = vmatpush1.msra.mxu0 %v528
    %530 = vmatprep.subr.mxu0 0.0
    %v531 = vand.u32 %v27, 4294901760
    %v532 = vsub.f32 %v27, %v531
    %v533 = vand.u32 %v532, 4294901760
    %534 = vmatpush1.msra.mxu0 %v533
    %535 = vmatprep.subr.mxu0 0.0
    %v536 = vand.u32 %v26, 4294901760
    %v537 = vsub.f32 %v26, %v536
    %v538 = vand.u32 %v537, 4294901760
    %539 = vmatpush1.msra.mxu0 %v538
    %540 = vmatprep.subr.mxu0 0.0
    %v541 = vand.u32 %v25, 4294901760
    %v542 = vsub.f32 %v25, %v541
    %v543 = vand.u32 %v542, 4294901760
    %544 = vmatpush1.msra.mxu0 %v543
    %545 = vmatprep.subr.mxu0 0.0
    %v546 = vand.u32 %v24, 4294901760
    %v547 = vsub.f32 %v24, %v546
    %v548 = vand.u32 %v547, 4294901760
    %549 = vmatpush1.msra.mxu0 %v548
    %550 = vmatprep.subr.mxu0 0.0
    %v551 = vand.u32 %v23, 4294901760
    %v552 = vsub.f32 %v23, %v551
    %v553 = vand.u32 %v552, 4294901760
    %554 = vmatpush1.msra.mxu0 %v553
    %555 = vmatprep.subr.mxu0 0.0
    %v556 = vand.u32 %v22, 4294901760
    %v557 = vsub.f32 %v22, %v556
    %v558 = vand.u32 %v557, 4294901760
    %559 = vmatpush1.msra.mxu0 %v558
    %560 = vmatprep.subr.mxu0 0.0
    %561 = vmatpush2.msra.mxu0 0.0
    %562 = vmatprep.subr.mxu0 0.0
    %563 = vmatpush2.msra.mxu0 0.0
    %564 = vmatprep.subr.mxu0 0.0
    %565 = vmatpush2.msra.mxu0 0.0
    %566 = vmatprep.subr.mxu0 0.0
    %567 = vmatpush2.msra.mxu0 0.0
    %568 = vmatprep.subr.mxu0 0.0
    %569 = vmatpush2.msra.mxu0 0.0
    %570 = vmatprep.subr.mxu0 0.0
    %571 = vmatpush2.msra.mxu0 0.0
    %572 = vmatprep.subr.mxu0 0.0
    %573 = vmatpush2.msra.mxu0 0.0
    %574 = vmatprep.subr.mxu0 0.0
    %575 = vmatpush2.msra.mxu0 0.0
    %576 = vmatprep.subr.mxu0 0.0
    %577 = vmatpush2.msra.mxu0 0.0
    %578 = vmatprep.subr.mxu0 0.0
    %579 = vmatpush2.msra.mxu0 0.0
    %580 = vmatprep.subr.mxu0 0.0
    %581 = vmatpush2.msra.mxu0 0.0
    %582 = vmatprep.subr.mxu0 0.0
    %583 = vmatpush2.msra.mxu0 0.0
    %584 = vmatprep.subr.mxu0 0.0
    %585 = vmatpush2.msra.mxu0 0.0
    %586 = vmatprep.subr.mxu0 0.0
    %587 = vmatpush2.msra.mxu0 0.0
    %588 = vmatprep.subr.mxu0 0.0
    %589 = vmatpush2.msra.mxu0 0.0
    %590 = vmatprep.subr.mxu0 0.0
    %591 = vmatpush2.msra.mxu0 0.0
    %592 = vmatprep.mubr.f32.mxu0 0.0
    %v593 = vand.u32 %v21, 4294901760
    %594 = vmatmul.mubr.f32.gmra.mxu0 %v593
    %v595 = vpop.f32.mrf.mxu0
    %v596 = vadd.f32 %v477, %v595
    %v597 = vpop.f32.mrf.mxu0
    %598 = vdwg.mxu0
    %599 = vmatprep.subr.mxu0 0.0
    %v600 = vand.u32 %v37, 4294901760
    %601 = vmatpush1.msra.mxu0 %v600
    %602 = vmatprep.subr.mxu0 0.0
    %v603 = vand.u32 %v36, 4294901760
    %604 = vmatpush1.msra.mxu0 %v603
    %605 = vmatprep.subr.mxu0 0.0
    %v606 = vand.u32 %v35, 4294901760
    %607 = vmatpush1.msra.mxu0 %v606
    %608 = vmatprep.subr.mxu0 0.0
    %v609 = vand.u32 %v34, 4294901760
    %610 = vmatpush1.msra.mxu0 %v609
    %611 = vmatprep.subr.mxu0 0.0
    %v612 = vand.u32 %v33, 4294901760
    %613 = vmatpush1.msra.mxu0 %v612
    %614 = vmatprep.subr.mxu0 0.0
    %v615 = vand.u32 %v32, 4294901760
    %616 = vmatpush1.msra.mxu0 %v615
    %617 = vmatprep.subr.mxu0 0.0
    %v618 = vand.u32 %v31, 4294901760
    %619 = vmatpush1.msra.mxu0 %v618
    %620 = vmatprep.subr.mxu0 0.0
    %v621 = vand.u32 %v30, 4294901760
    %622 = vmatpush1.msra.mxu0 %v621
    %623 = vmatprep.subr.mxu0 0.0
    %v624 = vand.u32 %v29, 4294901760
    %625 = vmatpush1.msra.mxu0 %v624
    %626 = vmatprep.subr.mxu0 0.0
    %v627 = vand.u32 %v28, 4294901760
    %628 = vmatpush1.msra.mxu0 %v627
    %629 = vmatprep.subr.mxu0 0.0
    %v630 = vand.u32 %v27, 4294901760
    %631 = vmatpush1.msra.mxu0 %v630
    %632 = vmatprep.subr.mxu0 0.0
    %v633 = vand.u32 %v26, 4294901760
    %634 = vmatpush1.msra.mxu0 %v633
    %635 = vmatprep.subr.mxu0 0.0
    %v636 = vand.u32 %v25, 4294901760
    %637 = vmatpush1.msra.mxu0 %v636
    %638 = vmatprep.subr.mxu0 0.0
    %v639 = vand.u32 %v24, 4294901760
    %640 = vmatpush1.msra.mxu0 %v639
    %641 = vmatprep.subr.mxu0 0.0
    %v642 = vand.u32 %v23, 4294901760
    %643 = vmatpush1.msra.mxu0 %v642
    %644 = vmatprep.subr.mxu0 0.0
    %v645 = vand.u32 %v22, 4294901760
    %646 = vmatpush1.msra.mxu0 %v645
    %647 = vmatprep.subr.mxu0 0.0
    %648 = vmatpush2.msra.mxu0 0.0
    %649 = vmatprep.subr.mxu0 0.0
    %650 = vmatpush2.msra.mxu0 0.0
    %651 = vmatprep.subr.mxu0 0.0
    %652 = vmatpush2.msra.mxu0 0.0
    %653 = vmatprep.subr.mxu0 0.0
    %654 = vmatpush2.msra.mxu0 0.0
    %655 = vmatprep.subr.mxu0 0.0
    %656 = vmatpush2.msra.mxu0 0.0
    %657 = vmatprep.subr.mxu0 0.0
    %658 = vmatpush2.msra.mxu0 0.0
    %659 = vmatprep.subr.mxu0 0.0
    %660 = vmatpush2.msra.mxu0 0.0
    %661 = vmatprep.subr.mxu0 0.0
    %662 = vmatpush2.msra.mxu0 0.0
    %663 = vmatprep.subr.mxu0 0.0
    %664 = vmatpush2.msra.mxu0 0.0
    %665 = vmatprep.subr.mxu0 0.0
    %666 = vmatpush2.msra.mxu0 0.0
    %667 = vmatprep.subr.mxu0 0.0
    %668 = vmatpush2.msra.mxu0 0.0
    %669 = vmatprep.subr.mxu0 0.0
    %670 = vmatpush2.msra.mxu0 0.0
    %671 = vmatprep.subr.mxu0 0.0
    %672 = vmatpush2.msra.mxu0 0.0
    %673 = vmatprep.subr.mxu0 0.0
    %674 = vmatpush2.msra.mxu0 0.0
    %675 = vmatprep.subr.mxu0 0.0
    %676 = vmatpush2.msra.mxu0 0.0
    %677 = vmatprep.subr.mxu0 0.0
    %678 = vmatpush2.msra.mxu0 0.0
    %679 = vmatprep.mubr.f32.mxu0 0.0
    %v680 = vand.u32 %v21, 4294901760
    %681 = vmatmul.mubr.f32.gmra.mxu0 %v680
    %v682 = vpop.f32.mrf.mxu0
    %v683 = vadd.f32 %v596, %v682
    %v684 = vpop.f32.mrf.mxu0
    %685 = vdwg.mxu0
    %v686 = vmax.f32 %v683, 0.0
    %v687 = vld [vmem:[%s3] sm:$0xff]
    %v688 = vld [vmem:[%s3 + $0x8] sm:$0xff]
    %v689 = vld [vmem:[%s3 + $0x10] sm:$0xff]
    %v690 = vld [vmem:[%s3 + $0x18] sm:$0xff]
    %v691 = vld [vmem:[%s3 + $0x20] sm:$0xff]
    %v692 = vld [vmem:[%s4] sm:$0x1]
    %v694 = vlaneseq
    %v695 = vshrl.u32 %v694, 7
    %v696 = vsub.s32 0, %v695
    %v697 = vrot.slane %v692, %v696
    %vm699 = vcmask 326656
    %v701 = vsel %vm699, %v686, 0
    %703 = vmatprep.subr.mxu0 0.0
    %704 = vmatpush1.msra.mxu0 0.0
    %705 = vmatprep.subr.mxu0 0.0
    %706 = vmatpush1.msra.mxu0 0.0
    %707 = vmatprep.subr.mxu0 0.0
    %708 = vmatpush1.msra.mxu0 0.0
    %709 = vmatprep.subr.mxu0 0.0
    %710 = vmatpush1.msra.mxu0 0.0
    %711 = vmatprep.subr.mxu0 0.0
    %712 = vmatpush1.msra.mxu0 0.0
    %713 = vmatprep.subr.mxu0 0.0
    %714 = vmatpush1.msra.mxu0 0.0
    %715 = vmatprep.subr.mxu0 0.0
    %716 = vmatpush1.msra.mxu0 0.0
    %717 = vmatprep.subr.mxu0 0.0
    %718 = vmatpush1.msra.mxu0 0.0
    %719 = vmatprep.subr.mxu0 0.0
    %720 = vmatpush1.msra.mxu0 0.0
    %721 = vmatprep.subr.mxu0 0.0
    %722 = vmatpush1.msra.mxu0 0.0
    %723 = vmatprep.subr.mxu0 0.0
    %724 = vmatpush1.msra.mxu0 0.0
    %725 = vmatprep.subr.mxu0 0.0
    %v726 = vand.u32 %v691, 4294901760
    %727 = vmatpush1.msra.mxu0 %v726
    %728 = vmatprep.subr.mxu0 0.0
    %v729 = vand.u32 %v690, 4294901760
    %730 = vmatpush1.msra.mxu0 %v729
    %731 = vmatprep.subr.mxu0 0.0
    %v732 = vand.u32 %v689, 4294901760
    %733 = vmatpush1.msra.mxu0 %v732
    %734 = vmatprep.subr.mxu0 0.0
    %v735 = vand.u32 %v688, 4294901760
    %736 = vmatpush1.msra.mxu0 %v735
    %737 = vmatprep.subr.mxu0 0.0
    %v738 = vand.u32 %v687, 4294901760
    %739 = vmatpush1.msra.mxu0 %v738
    %740 = vmatprep.subr.mxu0 0.0
    %741 = vmatpush2.msra.mxu0 0.0
    %742 = vmatprep.subr.mxu0 0.0
    %743 = vmatpush2.msra.mxu0 0.0
    %744 = vmatprep.subr.mxu0 0.0
    %745 = vmatpush2.msra.mxu0 0.0
    %746 = vmatprep.subr.mxu0 0.0
    %747 = vmatpush2.msra.mxu0 0.0
    %748 = vmatprep.subr.mxu0 0.0
    %749 = vmatpush2.msra.mxu0 0.0
    %750 = vmatprep.subr.mxu0 0.0
    %751 = vmatpush2.msra.mxu0 0.0
    %752 = vmatprep.subr.mxu0 0.0
    %753 = vmatpush2.msra.mxu0 0.0
    %754 = vmatprep.subr.mxu0 0.0
    %755 = vmatpush2.msra.mxu0 0.0
    %756 = vmatprep.subr.mxu0 0.0
    %757 = vmatpush2.msra.mxu0 0.0
    %758 = vmatprep.subr.mxu0 0.0
    %759 = vmatpush2.msra.mxu0 0.0
    %760 = vmatprep.subr.mxu0 0.0
    %761 = vmatpush2.msra.mxu0 0.0
    %762 = vmatprep.subr.mxu0 0.0
    %763 = vmatpush2.msra.mxu0 0.0
    %764 = vmatprep.subr.mxu0 0.0
    %765 = vmatpush2.msra.mxu0 0.0
    %766 = vmatprep.subr.mxu0 0.0
    %767 = vmatpush2.msra.mxu0 0.0
    %768 = vmatprep.subr.mxu0 0.0
    %769 = vmatpush2.msra.mxu0 0.0
    %770 = vmatprep.subr.mxu0 0.0
    %771 = vmatpush2.msra.mxu0 0.0
    %772 = vmatprep.mubr.f32.mxu0 0.0
    %v773 = vand.u32 %v701, 4294901760
    %v774 = vsub.f32 %v701, %v773
    %v775 = vand.u32 %v774, 4294901760
    %v776 = vsub.f32 %v774, %v775
    %v777 = vand.u32 %v776, 4294901760
    %778 = vmatmul.mubr.f32.gmra.mxu0 %v777
    %v779 = vpop.f32.mrf.mxu0
    %v780 = vadd.f32 %v697, %v779
    %v781 = vpop.f32.mrf.mxu0
    %782 = vdwg.mxu0
    %783 = vmatprep.subr.mxu0 0.0
    %784 = vmatpush1.msra.mxu0 0.0
    %785 = vmatprep.subr.mxu0 0.0
    %786 = vmatpush1.msra.mxu0 0.0
    %787 = vmatprep.subr.mxu0 0.0
    %788 = vmatpush1.msra.mxu0 0.0
    %789 = vmatprep.subr.mxu0 0.0
    %790 = vmatpush1.msra.mxu0 0.0
    %791 = vmatprep.subr.mxu0 0.0
    %792 = vmatpush1.msra.mxu0 0.0
    %793 = vmatprep.subr.mxu0 0.0
    %794 = vmatpush1.msra.mxu0 0.0
    %795 = vmatprep.subr.mxu0 0.0
    %796 = vmatpush1.msra.mxu0 0.0
    %797 = vmatprep.subr.mxu0 0.0
    %798 = vmatpush1.msra.mxu0 0.0
    %799 = vmatprep.subr.mxu0 0.0
    %800 = vmatpush1.msra.mxu0 0.0
    %801 = vmatprep.subr.mxu0 0.0
    %802 = vmatpush1.msra.mxu0 0.0
    %803 = vmatprep.subr.mxu0 0.0
    %804 = vmatpush1.msra.mxu0 0.0
    %805 = vmatprep.subr.mxu0 0.0
    %v806 = vand.u32 %v691, 4294901760
    %v807 = vsub.f32 %v691, %v806
    %v808 = vand.u32 %v807, 4294901760
    %v809 = vsub.f32 %v807, %v808
    %v810 = vand.u32 %v809, 4294901760
    %811 = vmatpush1.msra.mxu0 %v810
    %812 = vmatprep.subr.mxu0 0.0
    %v813 = vand.u32 %v690, 4294901760
    %v814 = vsub.f32 %v690, %v813
    %v815 = vand.u32 %v814, 4294901760
    %v816 = vsub.f32 %v814, %v815
    %v817 = vand.u32 %v816, 4294901760
    %818 = vmatpush1.msra.mxu0 %v817
    %819 = vmatprep.subr.mxu0 0.0
    %v820 = vand.u32 %v689, 4294901760
    %v821 = vsub.f32 %v689, %v820
    %v822 = vand.u32 %v821, 4294901760
    %v823 = vsub.f32 %v821, %v822
    %v824 = vand.u32 %v823, 4294901760
    %825 = vmatpush1.msra.mxu0 %v824
    %826 = vmatprep.subr.mxu0 0.0
    %v827 = vand.u32 %v688, 4294901760
    %v828 = vsub.f32 %v688, %v827
    %v829 = vand.u32 %v828, 4294901760
    %v830 = vsub.f32 %v828, %v829
    %v831 = vand.u32 %v830, 4294901760
    %832 = vmatpush1.msra.mxu0 %v831
    %833 = vmatprep.subr.mxu0 0.0
    %v834 = vand.u32 %v687, 4294901760
    %v835 = vsub.f32 %v687, %v834
    %v836 = vand.u32 %v835, 4294901760
    %v837 = vsub.f32 %v835, %v836
    %v838 = vand.u32 %v837, 4294901760
    %839 = vmatpush1.msra.mxu0 %v838
    %840 = vmatprep.subr.mxu0 0.0
    %841 = vmatpush2.msra.mxu0 0.0
    %842 = vmatprep.subr.mxu0 0.0
    %843 = vmatpush2.msra.mxu0 0.0
    %844 = vmatprep.subr.mxu0 0.0
    %845 = vmatpush2.msra.mxu0 0.0
    %846 = vmatprep.subr.mxu0 0.0
    %847 = vmatpush2.msra.mxu0 0.0
    %848 = vmatprep.subr.mxu0 0.0
    %849 = vmatpush2.msra.mxu0 0.0
    %850 = vmatprep.subr.mxu0 0.0
    %851 = vmatpush2.msra.mxu0 0.0
    %852 = vmatprep.subr.mxu0 0.0
    %853 = vmatpush2.msra.mxu0 0.0
    %854 = vmatprep.subr.mxu0 0.0
    %855 = vmatpush2.msra.mxu0 0.0
    %856 = vmatprep.subr.mxu0 0.0
    %857 = vmatpush2.msra.mxu0 0.0
    %858 = vmatprep.subr.mxu0 0.0
    %859 = vmatpush2.msra.mxu0 0.0
    %860 = vmatprep.subr.mxu0 0.0
    %861 = vmatpush2.msra.mxu0 0.0
    %862 = vmatprep.subr.mxu0 0.0
    %863 = vmatpush2.msra.mxu0 0.0
    %864 = vmatprep.subr.mxu0 0.0
    %865 = vmatpush2.msra.mxu0 0.0
    %866 = vmatprep.subr.mxu0 0.0
    %867 = vmatpush2.msra.mxu0 0.0
    %868 = vmatprep.subr.mxu0 0.0
    %869 = vmatpush2.msra.mxu0 0.0
    %870 = vmatprep.subr.mxu0 0.0
    %871 = vmatpush2.msra.mxu0 0.0
    %872 = vmatprep.mubr.f32.mxu0 0.0
    %v873 = vand.u32 %v701, 4294901760
    %874 = vmatmul.mubr.f32.gmra.mxu0 %v873
    %v875 = vpop.f32.mrf.mxu0
    %v876 = vadd.f32 %v780, %v875
    %v877 = vpop.f32.mrf.mxu0
    %878 = vdwg.mxu0
    %879 = vmatprep.subr.mxu0 0.0
    %880 = vmatpush1.msra.mxu0 0.0
    %881 = vmatprep.subr.mxu0 0.0
    %882 = vmatpush1.msra.mxu0 0.0
    %883 = vmatprep.subr.mxu0 0.0
    %884 = vmatpush1.msra.mxu0 0.0
    %885 = vmatprep.subr.mxu0 0.0
    %886 = vmatpush1.msra.mxu0 0.0
    %887 = vmatprep.subr.mxu0 0.0
    %888 = vmatpush1.msra.mxu0 0.0
    %889 = vmatprep.subr.mxu0 0.0
    %890 = vmatpush1.msra.mxu0 0.0
    %891 = vmatprep.subr.mxu0 0.0
    %892 = vmatpush1.msra.mxu0 0.0
    %893 = vmatprep.subr.mxu0 0.0
    %894 = vmatpush1.msra.mxu0 0.0
    %895 = vmatprep.subr.mxu0 0.0
    %896 = vmatpush1.msra.mxu0 0.0
    %897 = vmatprep.subr.mxu0 0.0
    %898 = vmatpush1.msra.mxu0 0.0
    %899 = vmatprep.subr.mxu0 0.0
    %900 = vmatpush1.msra.mxu0 0.0
    %901 = vmatprep.subr.mxu0 0.0
    %v902 = vand.u32 %v691, 4294901760
    %v903 = vsub.f32 %v691, %v902
    %904 = vmatpush1.msra.mxu0 %v903
    %905 = vmatprep.subr.mxu0 0.0
    %v906 = vand.u32 %v690, 4294901760
    %v907 = vsub.f32 %v690, %v906
    %908 = vmatpush1.msra.mxu0 %v907
    %909 = vmatprep.subr.mxu0 0.0
    %v910 = vand.u32 %v689, 4294901760
    %v911 = vsub.f32 %v689, %v910
    %912 = vmatpush1.msra.mxu0 %v911
    %913 = vmatprep.subr.mxu0 0.0
    %v914 = vand.u32 %v688, 4294901760
    %v915 = vsub.f32 %v688, %v914
    %916 = vmatpush1.msra.mxu0 %v915
    %917 = vmatprep.subr.mxu0 0.0
    %v918 = vand.u32 %v687, 4294901760
    %v919 = vsub.f32 %v687, %v918
    %920 = vmatpush1.msra.mxu0 %v919
    %921 = vmatprep.subr.mxu0 0.0
    %922 = vmatpush2.msra.mxu0 0.0
    %923 = vmatprep.subr.mxu0 0.0
    %924 = vmatpush2.msra.mxu0 0.0
    %925 = vmatprep.subr.mxu0 0.0
    %926 = vmatpush2.msra.mxu0 0.0
    %927 = vmatprep.subr.mxu0 0.0
    %928 = vmatpush2.msra.mxu0 0.0
    %929 = vmatprep.subr.mxu0 0.0
    %930 = vmatpush2.msra.mxu0 0.0
    %931 = vmatprep.subr.mxu0 0.0
    %932 = vmatpush2.msra.mxu0 0.0
    %933 = vmatprep.subr.mxu0 0.0
    %934 = vmatpush2.msra.mxu0 0.0
    %935 = vmatprep.subr.mxu0 0.0
    %936 = vmatpush2.msra.mxu0 0.0
    %937 = vmatprep.subr.mxu0 0.0
    %938 = vmatpush2.msra.mxu0 0.0
    %939 = vmatprep.subr.mxu0 0.0
    %940 = vmatpush2.msra.mxu0 0.0
    %941 = vmatprep.subr.mxu0 0.0
    %942 = vmatpush2.msra.mxu0 0.0
    %943 = vmatprep.subr.mxu0 0.0
    %944 = vmatpush2.msra.mxu0 0.0
    %945 = vmatprep.subr.mxu0 0.0
    %946 = vmatpush2.msra.mxu0 0.0
    %947 = vmatprep.subr.mxu0 0.0
    %948 = vmatpush2.msra.mxu0 0.0
    %949 = vmatprep.subr.mxu0 0.0
    %950 = vmatpush2.msra.mxu0 0.0
    %951 = vmatprep.subr.mxu0 0.0
    %952 = vmatpush2.msra.mxu0 0.0
    %953 = vmatprep.mubr.f32.mxu0 0.0
    %v954 = vand.u32 %v701, 4294901760
    %v955 = vsub.f32 %v701, %v954
    %956 = vmatmul.mubr.f32.gmra.mxu0 %v955
    %v957 = vpop.f32.mrf.mxu0
    %v958 = vadd.f32 %v876, %v957
    %v959 = vpop.f32.mrf.mxu0
    %960 = vdwg.mxu0
    %961 = vmatprep.subr.mxu0 0.0
    %962 = vmatpush1.msra.mxu0 0.0
    %963 = vmatprep.subr.mxu0 0.0
    %964 = vmatpush1.msra.mxu0 0.0
    %965 = vmatprep.subr.mxu0 0.0
    %966 = vmatpush1.msra.mxu0 0.0
    %967 = vmatprep.subr.mxu0 0.0
    %968 = vmatpush1.msra.mxu0 0.0
    %969 = vmatprep.subr.mxu0 0.0
    %970 = vmatpush1.msra.mxu0 0.0
    %971 = vmatprep.subr.mxu0 0.0
    %972 = vmatpush1.msra.mxu0 0.0
    %973 = vmatprep.subr.mxu0 0.0
    %974 = vmatpush1.msra.mxu0 0.0
    %975 = vmatprep.subr.mxu0 0.0
    %976 = vmatpush1.msra.mxu0 0.0
    %977 = vmatprep.subr.mxu0 0.0
    %978 = vmatpush1.msra.mxu0 0.0
    %979 = vmatprep.subr.mxu0 0.0
    %980 = vmatpush1.msra.mxu0 0.0
    %981 = vmatprep.subr.mxu0 0.0
    %982 = vmatpush1.msra.mxu0 0.0
    %983 = vmatprep.subr.mxu0 0.0
    %v984 = vand.u32 %v691, 4294901760
    %985 = vmatpush1.msra.mxu0 %v984
    %986 = vmatprep.subr.mxu0 0.0
    %v987 = vand.u32 %v690, 4294901760
    %988 = vmatpush1.msra.mxu0 %v987
    %989 = vmatprep.subr.mxu0 0.0
    %v990 = vand.u32 %v689, 4294901760
    %991 = vmatpush1.msra.mxu0 %v990
    %992 = vmatprep.subr.mxu0 0.0
    %v993 = vand.u32 %v688, 4294901760
    %994 = vmatpush1.msra.mxu0 %v993
    %995 = vmatprep.subr.mxu0 0.0
    %v996 = vand.u32 %v687, 4294901760
    %997 = vmatpush1.msra.mxu0 %v996
    %998 = vmatprep.subr.mxu0 0.0
    %999 = vmatpush2.msra.mxu0 0.0
    %1000 = vmatprep.subr.mxu0 0.0
    %1001 = vmatpush2.msra.mxu0 0.0
    %1002 = vmatprep.subr.mxu0 0.0
    %1003 = vmatpush2.msra.mxu0 0.0
    %1004 = vmatprep.subr.mxu0 0.0
    %1005 = vmatpush2.msra.mxu0 0.0
    %1006 = vmatprep.subr.mxu0 0.0
    %1007 = vmatpush2.msra.mxu0 0.0
    %1008 = vmatprep.subr.mxu0 0.0
    %1009 = vmatpush2.msra.mxu0 0.0
    %1010 = vmatprep.subr.mxu0 0.0
    %1011 = vmatpush2.msra.mxu0 0.0
    %1012 = vmatprep.subr.mxu0 0.0
    %1013 = vmatpush2.msra.mxu0 0.0
    %1014 = vmatprep.subr.mxu0 0.0
    %1015 = vmatpush2.msra.mxu0 0.0
    %1016 = vmatprep.subr.mxu0 0.0
    %1017 = vmatpush2.msra.mxu0 0.0
    %1018 = vmatprep.subr.mxu0 0.0
    %1019 = vmatpush2.msra.mxu0 0.0
    %1020 = vmatprep.subr.mxu0 0.0
    %1021 = vmatpush2.msra.mxu0 0.0
    %1022 = vmatprep.subr.mxu0 0.0
    %1023 = vmatpush2.msra.mxu0 0.0
    %1024 = vmatprep.subr.mxu0 0.0
    %1025 = vmatpush2.msra.mxu0 0.0
    %1026 = vmatprep.subr.mxu0 0.0
    %1027 = vmatpush2.msra.mxu0 0.0
    %1028 = vmatprep.subr.mxu0 0.0
    %1029 = vmatpush2.msra.mxu0 0.0
    %1030 = vmatprep.mubr.f32.mxu0 0.0
    %v1031 = vand.u32 %v701, 4294901760
    %v1032 = vsub.f32 %v701, %v1031
    %v1033 = vand.u32 %v1032, 4294901760
    %1034 = vmatmul.mubr.f32.gmra.mxu0 %v1033
    %v1035 = vpop.f32.mrf.mxu0
    %v1036 = vadd.f32 %v958, %v1035
    %v1037 = vpop.f32.mrf.mxu0
    %1038 = vdwg.mxu0
    %1039 = vmatprep.subr.mxu0 0.0
    %1040 = vmatpush1.msra.mxu0 0.0
    %1041 = vmatprep.subr.mxu0 0.0
    %1042 = vmatpush1.msra.mxu0 0.0
    %1043 = vmatprep.subr.mxu0 0.0
    %1044 = vmatpush1.msra.mxu0 0.0
    %1045 = vmatprep.subr.mxu0 0.0
    %1046 = vmatpush1.msra.mxu0 0.0
    %1047 = vmatprep.subr.mxu0 0.0
    %1048 = vmatpush1.msra.mxu0 0.0
    %1049 = vmatprep.subr.mxu0 0.0
    %1050 = vmatpush1.msra.mxu0 0.0
    %1051 = vmatprep.subr.mxu0 0.0
    %1052 = vmatpush1.msra.mxu0 0.0
    %1053 = vmatprep.subr.mxu0 0.0
    %1054 = vmatpush1.msra.mxu0 0.0
    %1055 = vmatprep.subr.mxu0 0.0
    %1056 = vmatpush1.msra.mxu0 0.0
    %1057 = vmatprep.subr.mxu0 0.0
    %1058 = vmatpush1.msra.mxu0 0.0
    %1059 = vmatprep.subr.mxu0 0.0
    %1060 = vmatpush1.msra.mxu0 0.0
    %1061 = vmatprep.subr.mxu0 0.0
    %v1062 = vand.u32 %v691, 4294901760
    %v1063 = vsub.f32 %v691, %v1062
    %v1064 = vand.u32 %v1063, 4294901760
    %1065 = vmatpush1.msra.mxu0 %v1064
    %1066 = vmatprep.subr.mxu0 0.0
    %v1067 = vand.u32 %v690, 4294901760
    %v1068 = vsub.f32 %v690, %v1067
    %v1069 = vand.u32 %v1068, 4294901760
    %1070 = vmatpush1.msra.mxu0 %v1069
    %1071 = vmatprep.subr.mxu0 0.0
    %v1072 = vand.u32 %v689, 4294901760
    %v1073 = vsub.f32 %v689, %v1072
    %v1074 = vand.u32 %v1073, 4294901760
    %1075 = vmatpush1.msra.mxu0 %v1074
    %1076 = vmatprep.subr.mxu0 0.0
    %v1077 = vand.u32 %v688, 4294901760
    %v1078 = vsub.f32 %v688, %v1077
    %v1079 = vand.u32 %v1078, 4294901760
    %1080 = vmatpush1.msra.mxu0 %v1079
    %1081 = vmatprep.subr.mxu0 0.0
    %v1082 = vand.u32 %v687, 4294901760
    %v1083 = vsub.f32 %v687, %v1082
    %v1084 = vand.u32 %v1083, 4294901760
    %1085 = vmatpush1.msra.mxu0 %v1084
    %1086 = vmatprep.subr.mxu0 0.0
    %1087 = vmatpush2.msra.mxu0 0.0
    %1088 = vmatprep.subr.mxu0 0.0
    %1089 = vmatpush2.msra.mxu0 0.0
    %1090 = vmatprep.subr.mxu0 0.0
    %1091 = vmatpush2.msra.mxu0 0.0
    %1092 = vmatprep.subr.mxu0 0.0
    %1093 = vmatpush2.msra.mxu0 0.0
    %1094 = vmatprep.subr.mxu0 0.0
    %1095 = vmatpush2.msra.mxu0 0.0
    %1096 = vmatprep.subr.mxu0 0.0
    %1097 = vmatpush2.msra.mxu0 0.0
    %1098 = vmatprep.subr.mxu0 0.0
    %1099 = vmatpush2.msra.mxu0 0.0
    %1100 = vmatprep.subr.mxu0 0.0
    %1101 = vmatpush2.msra.mxu0 0.0
    %1102 = vmatprep.subr.mxu0 0.0
    %1103 = vmatpush2.msra.mxu0 0.0
    %1104 = vmatprep.subr.mxu0 0.0
    %1105 = vmatpush2.msra.mxu0 0.0
    %1106 = vmatprep.subr.mxu0 0.0
    %1107 = vmatpush2.msra.mxu0 0.0
    %1108 = vmatprep.subr.mxu0 0.0
    %1109 = vmatpush2.msra.mxu0 0.0
    %1110 = vmatprep.subr.mxu0 0.0
    %1111 = vmatpush2.msra.mxu0 0.0
    %1112 = vmatprep.subr.mxu0 0.0
    %1113 = vmatpush2.msra.mxu0 0.0
    %1114 = vmatprep.subr.mxu0 0.0
    %1115 = vmatpush2.msra.mxu0 0.0
    %1116 = vmatprep.subr.mxu0 0.0
    %1117 = vmatpush2.msra.mxu0 0.0
    %1118 = vmatprep.mubr.f32.mxu0 0.0
    %v1119 = vand.u32 %v701, 4294901760
    %1120 = vmatmul.mubr.f32.gmra.mxu0 %v1119
    %v1121 = vpop.f32.mrf.mxu0
    %v1122 = vadd.f32 %v1036, %v1121
    %v1123 = vpop.f32.mrf.mxu0
    %1124 = vdwg.mxu0
    %1125 = vmatprep.subr.mxu0 0.0
    %1126 = vmatpush1.msra.mxu0 0.0
    %1127 = vmatprep.subr.mxu0 0.0
    %1128 = vmatpush1.msra.mxu0 0.0
    %1129 = vmatprep.subr.mxu0 0.0
    %1130 = vmatpush1.msra.mxu0 0.0
    %1131 = vmatprep.subr.mxu0 0.0
    %1132 = vmatpush1.msra.mxu0 0.0
    %1133 = vmatprep.subr.mxu0 0.0
    %1134 = vmatpush1.msra.mxu0 0.0
    %1135 = vmatprep.subr.mxu0 0.0
    %1136 = vmatpush1.msra.mxu0 0.0
    %1137 = vmatprep.subr.mxu0 0.0
    %1138 = vmatpush1.msra.mxu0 0.0
    %1139 = vmatprep.subr.mxu0 0.0
    %1140 = vmatpush1.msra.mxu0 0.0
    %1141 = vmatprep.subr.mxu0 0.0
    %1142 = vmatpush1.msra.mxu0 0.0
    %1143 = vmatprep.subr.mxu0 0.0
    %1144 = vmatpush1.msra.mxu0 0.0
    %1145 = vmatprep.subr.mxu0 0.0
    %1146 = vmatpush1.msra.mxu0 0.0
    %1147 = vmatprep.subr.mxu0 0.0
    %v1148 = vand.u32 %v691, 4294901760
    %1149 = vmatpush1.msra.mxu0 %v1148
    %1150 = vmatprep.subr.mxu0 0.0
    %v1151 = vand.u32 %v690, 4294901760
    %1152 = vmatpush1.msra.mxu0 %v1151
    %1153 = vmatprep.subr.mxu0 0.0
    %v1154 = vand.u32 %v689, 4294901760
    %1155 = vmatpush1.msra.mxu0 %v1154
    %1156 = vmatprep.subr.mxu0 0.0
    %v1157 = vand.u32 %v688, 4294901760
    %1158 = vmatpush1.msra.mxu0 %v1157
    %1159 = vmatprep.subr.mxu0 0.0
    %v1160 = vand.u32 %v687, 4294901760
    %1161 = vmatpush1.msra.mxu0 %v1160
    %1162 = vmatprep.subr.mxu0 0.0
    %1163 = vmatpush2.msra.mxu0 0.0
    %1164 = vmatprep.subr.mxu0 0.0
    %1165 = vmatpush2.msra.mxu0 0.0
    %1166 = vmatprep.subr.mxu0 0.0
    %1167 = vmatpush2.msra.mxu0 0.0
    %1168 = vmatprep.subr.mxu0 0.0
    %1169 = vmatpush2.msra.mxu0 0.0
    %1170 = vmatprep.subr.mxu0 0.0
    %1171 = vmatpush2.msra.mxu0 0.0
    %1172 = vmatprep.subr.mxu0 0.0
    %1173 = vmatpush2.msra.mxu0 0.0
    %1174 = vmatprep.subr.mxu0 0.0
    %1175 = vmatpush2.msra.mxu0 0.0
    %1176 = vmatprep.subr.mxu0 0.0
    %1177 = vmatpush2.msra.mxu0 0.0
    %1178 = vmatprep.subr.mxu0 0.0
    %1179 = vmatpush2.msra.mxu0 0.0
    %1180 = vmatprep.subr.mxu0 0.0
    %1181 = vmatpush2.msra.mxu0 0.0
    %1182 = vmatprep.subr.mxu0 0.0
    %1183 = vmatpush2.msra.mxu0 0.0
    %1184 = vmatprep.subr.mxu0 0.0
    %1185 = vmatpush2.msra.mxu0 0.0
    %1186 = vmatprep.subr.mxu0 0.0
    %1187 = vmatpush2.msra.mxu0 0.0
    %1188 = vmatprep.subr.mxu0 0.0
    %1189 = vmatpush2.msra.mxu0 0.0
    %1190 = vmatprep.subr.mxu0 0.0
    %1191 = vmatpush2.msra.mxu0 0.0
    %1192 = vmatprep.subr.mxu0 0.0
    %1193 = vmatpush2.msra.mxu0 0.0
    %1194 = vmatprep.mubr.f32.mxu0 0.0
    %v1195 = vand.u32 %v701, 4294901760
    %1196 = vmatmul.mubr.f32.gmra.mxu0 %v1195
    %v1197 = vpop.f32.mrf.mxu0
    %v1198 = vadd.f32 %v1122, %v1197
    %v1199 = vpop.f32.mrf.mxu0
    %1200 = vdwg.mxu0
    %v1201 = vmax.f32 %v1198, 0.0
    %vm1202 = vcmask 64512
    %1203 = vst.msk [vmem:[#allocation2] sm:$0xff] %vm1202, %v1201
    // Predicated region
    $region22: #{tpu_custom_call.1} parent=1 // pred_check
      _
    $region23: #{tpu_custom_call.1} parent=1 // pred_check_branch
      %1205 = sbr.rel (0) target = $region25
    $region24: #{tpu_custom_call.1} parent=1 // pred_region
      %s1207 = ssub.s32 128, 32
      %1208 = vsyncadd [#allocation3], %s1207
      %s1209 = sshll.u32 [#allocation2], 4
      %s1210 = int_to_ptr.vmem [resolvable:$true] %s1209
      %1215 = dma.vmem_to_hbm [thread:$0]  %s1210, 32, %s5, [#allocation3], 32, 32, 2
    $region25: #{tpu_custom_call.1} parent=1 // pred_fallthru
      _
    // Predicated region
    $region26: #{tpu_custom_call.1} parent=1 // pred_check
      _
    $region27: #{tpu_custom_call.1} parent=1 // pred_check_branch
      %1217 = sbr.rel (0) target = $region29
    $region28: #{tpu_custom_call.1} parent=1 // pred_region
      %1218 = dma.done [#allocation3], 128
    $region29: #{tpu_custom_call.1} parent=1 // pred_fallthru
      _
    %1219 = vsyncpa [#allocation3], 1

</llo_original>
